<compile_context>
chip_gen: v7x
topology: tpu7x:2x2x1
jax: 0.10.0
libtpu: 0.0.40
codegen_flags: <defaults>
</compile_context>

<pallas_src>
import jax
import jax.numpy as jnp
import numpy as np
from jax import lax
from jax.experimental import pallas as pl
from jax.experimental.pallas import tpu as pltpu

# ---- static problem sizes (small, synthetic) --------------------------------
N = 2
C_IN = 3
H = W = 32
C_OUT = 32                                     # num_init_features
KSIZE = 7
STRIDE = 2
PAD = 3
H_OUT = (H + 2 * PAD - KSIZE) // STRIDE + 1    # 16
W_OUT = (W + 2 * PAD - KSIZE) // STRIDE + 1    # 16
P_OUT = (H_OUT + 2 * 1 - 3) // 2 + 1           # 8  (maxpool k=3, s=2, p=1)
KDIM = KSIZE * KSIZE * C_IN                    # 147
BN_EPS = 1e-3

HW = H_OUT * W_OUT                             # 256 conv-output rows per image
PP = P_OUT * P_OUT                             # 64 pooled rows per image
HALF = 2 * PP                                  # 128 even-h (or odd-h) rows per image

# Per-image conv-output row ordering produced by the wrapper:
#   r = (h % 2) * HALF + (w % 2) * PP + (h // 2) * P_OUT + (w // 2)
# With this ordering every neighbour needed by the pool is a contiguous slice.


def input_block_kernel(patches_ref, w_ref, bias_ref, out_ref, ybuf, mhbuf):
    # patches_ref: [HW, KDIM]   bf16 im2col patches for ONE image, permuted rows
    # w_ref:       [KDIM, C_OUT] bf16 conv weights with BN scale folded in
    # bias_ref:    [1, C_OUT]    f32 folded BN bias (beta - mean*scale)
    # out_ref:     [PP, C_OUT]   f32 pooled output, row = ph*P_OUT + pw
    # ybuf:        [HW, C_OUT]   scratch: ReLU(conv) in permuted row order
    # mhbuf:       [HALF, C_OUT] scratch: H-direction 3-max at even h

    # Conv (+ BN scale, pre-folded) as one MXU matmul, then bias + ReLU.  Park
    # the result in VMEM immediately so the [256,32] value is not kept live
    # across the pooling stage (pool inputs are re-read from ybuf below).
    y = jnp.dot(patches_ref[...], w_ref[...],
                preferred_element_type=jnp.float32)          # [HW, C_OUT] f32
    ybuf[...] = jnp.maximum(y + bias_ref[...], 0.0)

    # ---- MaxPool 3x3, stride 2, pad 1 (separable max) -----------------------
    # ReLU output >= 0, so 0 stands in for PyTorch's implicit -inf padding.

    # H-direction 3-max at even h (the only rows the pool centres use).
    # Even-h rows are ybuf[0:HALF]; the h+1 neighbour of row r is ybuf[r+HALF];
    # the h-1 neighbour is ybuf[r+HALF-P_OUT], invalid (pool padding) at ph==0.
    r = lax.broadcasted_iota(jnp.int32, (HALF, 1), 0)
    ph_ok = (r % PP) >= P_OUT                                # ph > 0
    h_m1 = jnp.where(ph_ok, ybuf[pl.ds(HALF - P_OUT, HALF), :], 0.0)
    mhbuf[...] = jnp.maximum(
        jnp.maximum(ybuf[pl.ds(0, HALF), :], ybuf[pl.ds(HALF, HALF), :]), h_m1)

    # W-direction 3-max fused with the stride-2 downselect.  mhbuf rows [0,PP)
    # are the even-w (pool centre) columns ordered (ph,pw); rows [PP,2*PP) are
    # the odd-w columns.  The w+1 neighbour of row q is mhbuf[PP+q]; the w-1
    # neighbour is mhbuf[PP+q-1], invalid (pool padding) at pw==0.
    q = lax.broadcasted_iota(jnp.int32, (PP, 1), 0)
    pw_ok = (q % P_OUT) != 0                                 # pw > 0
    w_m1 = jnp.where(pw_ok, mhbuf[pl.ds(PP - 1, PP), :], 0.0)
    out_ref[...] = jnp.maximum(
        jnp.maximum(mhbuf[pl.ds(0, PP), :], mhbuf[pl.ds(PP, PP), :]),
        w_m1).astype(out_ref.dtype)


def make_pallas_input_block(w, gamma, beta, running_mean, running_var):
    scale = gamma / jnp.sqrt(running_var + BN_EPS)
    bias = beta - running_mean * scale

    # Flatten the conv weight with the SAME patch-extraction primitive and the
    # SAME dimension_numbers used for the activations, so the contraction-dim
    # ordering matches by construction.
    dn = ('NHWC', 'HWIO', 'NHWC')
    w_nhwc = jnp.transpose(w.astype(jnp.float32), (0, 2, 3, 1))   # [C_OUT,7,7,3]
    w_cols = lax.conv_general_dilated_patches(
        w_nhwc, filter_shape=(KSIZE, KSIZE), window_strides=(1, 1),
        padding='VALID', dimension_numbers=dn)                    # [C_OUT,1,1,KDIM]
    w_flat = w_cols.reshape(C_OUT, KDIM).T                        # [KDIM, C_OUT]
    # Fold the BN scale into the weights; cast matmul operands to bf16.
    w_scaled = (w_flat * scale[None, :]).astype(jnp.bfloat16)
    bias2 = bias.reshape(1, C_OUT).astype(jnp.float32)

    grid_spec = pltpu.PrefetchScalarGridSpec(
        num_scalar_prefetch=0,
        grid=(N,),                                  # one image per grid step
        in_specs=[
            pl.BlockSpec((HW, KDIM), lambda n: (n, 0)),
            pl.BlockSpec((KDIM, C_OUT), lambda n: (0, 0)),
            pl.BlockSpec((1, C_OUT), lambda n: (0, 0)),
        ],
        out_specs=pl.BlockSpec((PP, C_OUT), lambda n: (n, 0)),
        scratch_shapes=[
            pltpu.VMEM((HW, C_OUT), jnp.float32),    # ybuf
            pltpu.VMEM((HALF, C_OUT), jnp.float32),  # mhbuf
        ],
    )
    call = pl.pallas_call(
        input_block_kernel,
        out_shape=jax.ShapeDtypeStruct((N * PP, C_OUT), jnp.float32),
        grid_spec=grid_spec,
        compiler_params=pltpu.CompilerParams(
            dimension_semantics=("parallel",)),
    )

    def forward(x_nchw):
        # ---- XLA glue: bf16 im2col patches, KDIM last -----------------------
        x = jnp.transpose(x_nchw, (0, 2, 3, 1)).astype(jnp.bfloat16)   # NHWC
        patches = lax.conv_general_dilated_patches(
            x, filter_shape=(KSIZE, KSIZE), window_strides=(STRIDE, STRIDE),
            padding=((PAD, PAD), (PAD, PAD)),
            dimension_numbers=dn)                     # [N, Ho, Wo, KDIM] bf16
        # Permute rows to r = (h%2)*HALF + (w%2)*PP + (h//2)*P_OUT + (w//2) so
        # the in-kernel pool is contiguous-slice only.
        p = patches.reshape(N, P_OUT, 2, P_OUT, 2, KDIM)
        p = jnp.transpose(p, (0, 2, 4, 1, 3, 5)).reshape(N * HW, KDIM)
        out = call(p, w_scaled, bias2)                # [N*PP, C_OUT], rows (n,ph,pw)
        out = out.reshape(N, P_OUT, P_OUT, C_OUT)
        return jnp.transpose(out, (0, 3, 1, 2))       # back to NCHW

    return jax.jit(forward)


def reference_input_block(x, w, gamma, beta, rm, rv):
    y = lax.conv_general_dilated(
        x, w, (STRIDE, STRIDE), ((PAD, PAD), (PAD, PAD)),
        dimension_numbers=('NCHW', 'OIHW', 'NCHW'),
        precision=lax.Precision.HIGHEST)
    scale = gamma / jnp.sqrt(rv + BN_EPS)
    bias = beta - rm * scale
    y = y * scale[None, :, None, None] + bias[None, :, None, None]
    y = jnp.maximum(y, 0.0)
    yp = jnp.pad(y, ((0, 0), (0, 0), (1, 1), (1, 1)),
                 constant_values=-jnp.inf)
    return lax.reduce_window(yp, -jnp.inf, lax.max,
                             (1, 1, 3, 3), (1, 1, 2, 2), 'VALID')


if __name__ == "__main__":
    key = jax.random.PRNGKey(0)
    kx, kw_, kg, kb, km, kv = jax.random.split(key, 6)
    x = jax.random.normal(kx, (N, C_IN, H, W), jnp.float32)
    w = jax.random.normal(kw_, (C_OUT, C_IN, KSIZE, KSIZE), jnp.float32) * 0.1
    gamma = jax.random.uniform(kg, (C_OUT,), jnp.float32, 0.5, 1.5)
    beta = jax.random.normal(kb, (C_OUT,), jnp.float32) * 0.1
    running_mean = jax.random.normal(km, (C_OUT,), jnp.float32) * 0.1
    running_var = jax.random.uniform(kv, (C_OUT,), jnp.float32, 0.5, 1.5)

    fwd = make_pallas_input_block(w, gamma, beta, running_mean, running_var)
    out = jax.block_until_ready(fwd(x))

    ref = reference_input_block(x, w, gamma, beta, running_mean, running_var)
    assert out.shape == (N, C_OUT, P_OUT, P_OUT), out.shape
    # Tolerance only needs to cover bf16 matmul operands (f32 accumulation).
    np.testing.assert_allclose(np.asarray(out), np.asarray(ref),
                               rtol=2e-2, atol=3e-2)
    print("KERNEL_OK")
</pallas_src>

<mosaic_0001>
module attributes {stable_mosaic.version = 11 : i64} {
  func.func @input_block_kernel(%arg0: i32, %arg1: memref<256x147xbf16, #tpu.memory_space<vmem>>, %arg2: memref<147x32xbf16, #tpu.memory_space<vmem>>, %arg3: memref<1x32xf32, #tpu.memory_space<vmem>>, %arg4: memref<64x32xf32, #tpu.memory_space<vmem>>, %arg5: memref<256x32xf32, #tpu.memory_space<vmem>>, %arg6: memref<128x32xf32, #tpu.memory_space<vmem>>) attributes {dimension_semantics = [#tpu.dimension_semantics<parallel>], iteration_bounds = array<i64: 2>, scalar_prefetch = 0 : i64, scratch_operands = 2 : i64, tpu.core_type = #tpu.core_type<tc>, window_params = [{transform_indices = @transform_0, window_bounds = array<i64: 256, 147>}, {pipeline_mode = #tpu.pipeline_mode<synchronous>, transform_indices = @transform_1, window_bounds = array<i64: 147, 32>}, {pipeline_mode = #tpu.pipeline_mode<synchronous>, transform_indices = @transform_2, window_bounds = array<i64: 1, 32>}, {transform_indices = @transform_3, window_bounds = array<i64: 64, 32>}]} {
    %c0 = arith.constant 0 : index
    %c0_0 = arith.constant 0 : index
    %0 = vector.load %arg1[%c0, %c0_0] : memref<256x147xbf16, #tpu.memory_space<vmem>>, vector<256x147xbf16>
    %c0_1 = arith.constant 0 : index
    %c0_2 = arith.constant 0 : index
    %1 = vector.load %arg2[%c0_1, %c0_2] : memref<147x32xbf16, #tpu.memory_space<vmem>>, vector<147x32xbf16>
    %cst = arith.constant dense<0.000000e+00> : vector<256x32xf32>
    %2 = tpu.matmul %0, %1, %cst {dimension_numbers = #tpu.dot_dimension_numbers<[1], [0], [0], [1], [0, 0, 1, 1], [], []>} : vector<256x147xbf16>, vector<147x32xbf16>, vector<256x32xf32> -> vector<256x32xf32>
    %c0_3 = arith.constant 0 : index
    %c0_4 = arith.constant 0 : index
    %3 = vector.load %arg3[%c0_3, %c0_4] : memref<1x32xf32, #tpu.memory_space<vmem>>, vector<1x32xf32>
    %4 = vector.broadcast %3 : vector<1x32xf32> to vector<256x32xf32>
    %5 = arith.addf %2, %4 : vector<256x32xf32>
    %cst_5 = arith.constant 0.000000e+00 : f32
    %6 = vector.broadcast %cst_5 : f32 to vector<256x32xf32>
    %7 = arith.maximumf %5, %6 : vector<256x32xf32>
    %c0_6 = arith.constant 0 : index
    %c0_7 = arith.constant 0 : index
    %8 = vector.load %arg5[%c0_6, %c0_7] : memref<256x32xf32, #tpu.memory_space<vmem>>, vector<256x32xf32>
    tpu.vector_store %arg5[%c0_6, %c0_7], %7 {strides = array<i32>} : memref<256x32xf32, #tpu.memory_space<vmem>>, vector<256x32xf32>,
    %9 = tpu.iota {dimensions = array<i32: 0>} : vector<128x1xi32>
    %c64_i32 = arith.constant 64 : i32
    %c0_i32 = arith.constant 0 : i32
    %10 = arith.cmpi eq, %c64_i32, %c0_i32 : i32
    %c1_i32 = arith.constant 1 : i32
    %11 = arith.select %10, %c1_i32, %c64_i32 : i32
    %12 = vector.broadcast %11 : i32 to vector<128x1xi32>
    %13 = arith.remsi %9, %12 : vector<128x1xi32>
    %c0_i32_8 = arith.constant 0 : i32
    %14 = vector.broadcast %c0_i32_8 : i32 to vector<128x1xi32>
    %15 = arith.cmpi ne, %13, %14 : vector<128x1xi32>
    %c0_i32_9 = arith.constant 0 : i32
    %16 = vector.broadcast %c0_i32_9 : i32 to vector<128x1xi32>
    %17 = arith.cmpi slt, %13, %16 : vector<128x1xi32>
    %c0_i32_10 = arith.constant 0 : i32
    %18 = arith.cmpi slt, %11, %c0_i32_10 : i32
    %19 = vector.broadcast %18 : i1 to vector<128x1xi1>
    %20 = vector.broadcast %19 : vector<128x1xi1> to vector<128x1xi1>
    %21 = arith.xori %17, %20 : vector<128x1xi1>
    %22 = arith.andi %21, %15 : vector<128x1xi1>
    %23 = vector.broadcast %11 : i32 to vector<128x1xi32>
    %24 = arith.addi %13, %23 : vector<128x1xi32>
    %25 = arith.select %22, %24, %13 : vector<128x1xi1>, vector<128x1xi32>
    %c8_i32 = arith.constant 8 : i32
    %26 = vector.broadcast %c8_i32 : i32 to vector<128x1xi32>
    %27 = arith.cmpi sge, %25, %26 : vector<128x1xi32>
    %c120 = arith.constant 120 : index
    %c0_11 = arith.constant 0 : index
    %28 = vector.load %arg5[%c120, %c0_11] : memref<256x32xf32, #tpu.memory_space<vmem>>, vector<128x32xf32>
    %cst_12 = arith.constant 0.000000e+00 : f32
    %29 = vector.shape_cast %27 : vector<128x1xi1> to vector<128x1xi1>
    %30 = vector.broadcast %29 : vector<128x1xi1> to vector<128x32xi1>
    %31 = vector.broadcast %cst_12 : f32 to vector<128x32xf32>
    %32 = arith.select %30, %28, %31 : vector<128x32xi1>, vector<128x32xf32>
    %c0_13 = arith.constant 0 : index
    %c0_14 = arith.constant 0 : index
    %33 = vector.load %arg5[%c0_13, %c0_14] : memref<256x32xf32, #tpu.memory_space<vmem>>, vector<128x32xf32>
    %c128 = arith.constant 128 : index
    %c0_15 = arith.constant 0 : index
    %34 = vector.load %arg5[%c128, %c0_15] : memref<256x32xf32, #tpu.memory_space<vmem>>, vector<128x32xf32>
    %35 = arith.maximumf %33, %34 : vector<128x32xf32>
    %36 = arith.maximumf %35, %32 : vector<128x32xf32>
    %c0_16 = arith.constant 0 : index
    %c0_17 = arith.constant 0 : index
    %37 = vector.load %arg6[%c0_16, %c0_17] : memref<128x32xf32, #tpu.memory_space<vmem>>, vector<128x32xf32>
    tpu.vector_store %arg6[%c0_16, %c0_17], %36 {strides = array<i32>} : memref<128x32xf32, #tpu.memory_space<vmem>>, vector<128x32xf32>,
    %38 = tpu.iota {dimensions = array<i32: 0>} : vector<64x1xi32>
    %c8_i32_18 = arith.constant 8 : i32
    %c0_i32_19 = arith.constant 0 : i32
    %39 = arith.cmpi eq, %c8_i32_18, %c0_i32_19 : i32
    %c1_i32_20 = arith.constant 1 : i32
    %40 = arith.select %39, %c1_i32_20, %c8_i32_18 : i32
    %41 = vector.broadcast %40 : i32 to vector<64x1xi32>
    %42 = arith.remsi %38, %41 : vector<64x1xi32>
    %c0_i32_21 = arith.constant 0 : i32
    %43 = vector.broadcast %c0_i32_21 : i32 to vector<64x1xi32>
    %44 = arith.cmpi ne, %42, %43 : vector<64x1xi32>
    %c0_i32_22 = arith.constant 0 : i32
    %45 = vector.broadcast %c0_i32_22 : i32 to vector<64x1xi32>
    %46 = arith.cmpi slt, %42, %45 : vector<64x1xi32>
    %c0_i32_23 = arith.constant 0 : i32
    %47 = arith.cmpi slt, %40, %c0_i32_23 : i32
    %48 = vector.broadcast %47 : i1 to vector<64x1xi1>
    %49 = vector.broadcast %48 : vector<64x1xi1> to vector<64x1xi1>
    %50 = arith.xori %46, %49 : vector<64x1xi1>
    %51 = arith.andi %50, %44 : vector<64x1xi1>
    %52 = vector.broadcast %40 : i32 to vector<64x1xi32>
    %53 = arith.addi %42, %52 : vector<64x1xi32>
    %54 = arith.select %51, %53, %42 : vector<64x1xi1>, vector<64x1xi32>
    %c0_i32_24 = arith.constant 0 : i32
    %55 = vector.broadcast %c0_i32_24 : i32 to vector<64x1xi32>
    %56 = arith.cmpi ne, %54, %55 : vector<64x1xi32>
    %c63 = arith.constant 63 : index
    %c0_25 = arith.constant 0 : index
    %57 = vector.load %arg6[%c63, %c0_25] : memref<128x32xf32, #tpu.memory_space<vmem>>, vector<64x32xf32>
    %cst_26 = arith.constant 0.000000e+00 : f32
    %58 = vector.shape_cast %56 : vector<64x1xi1> to vector<64x1xi1>
    %59 = vector.broadcast %58 : vector<64x1xi1> to vector<64x32xi1>
    %60 = vector.broadcast %cst_26 : f32 to vector<64x32xf32>
    %61 = arith.select %59, %57, %60 : vector<64x32xi1>, vector<64x32xf32>
    %c0_27 = arith.constant 0 : index
    %c0_28 = arith.constant 0 : index
    %62 = vector.load %arg6[%c0_27, %c0_28] : memref<128x32xf32, #tpu.memory_space<vmem>>, vector<64x32xf32>
    %c64 = arith.constant 64 : index
    %c0_29 = arith.constant 0 : index
    %63 = vector.load %arg6[%c64, %c0_29] : memref<128x32xf32, #tpu.memory_space<vmem>>, vector<64x32xf32>
    %64 = arith.maximumf %62, %63 : vector<64x32xf32>
    %65 = arith.maximumf %64, %61 : vector<64x32xf32>
    %c0_30 = arith.constant 0 : index
    %c0_31 = arith.constant 0 : index
    %66 = vector.load %arg4[%c0_30, %c0_31] : memref<64x32xf32, #tpu.memory_space<vmem>>, vector<64x32xf32>
    tpu.vector_store %arg4[%c0_30, %c0_31], %65 {strides = array<i32>} : memref<64x32xf32, #tpu.memory_space<vmem>>, vector<64x32xf32>,
    return
  }
  func.func @transform_0(%arg0: i32) -> (i32, i32) {
    %c0_i32 = arith.constant 0 : i32
    %c0_i32_0 = arith.constant 0 : i32
    return %arg0, %c0_i32 : i32, i32
  }
  func.func @transform_1(%arg0: i32) -> (i32, i32) {
    %c0_i32 = arith.constant 0 : i32
    %c0_i32_0 = arith.constant 0 : i32
    %c0_i32_1 = arith.constant 0 : i32
    return %c0_i32, %c0_i32_0 : i32, i32
  }
  func.func @transform_2(%arg0: i32) -> (i32, i32) {
    %c0_i32 = arith.constant 0 : i32
    %c0_i32_0 = arith.constant 0 : i32
    %c0_i32_1 = arith.constant 0 : i32
    return %c0_i32, %c0_i32_0 : i32, i32
  }
  func.func @transform_3(%arg0: i32) -> (i32, i32) {
    %c0_i32 = arith.constant 0 : i32
    %c0_i32_0 = arith.constant 0 : i32
    return %arg0, %c0_i32 : i32, i32
  }
}

</mosaic_0001>

<llo_original>
// kernel: forward.1
$region0: #{forward.1}
  #allocation0 [shape = 'u32[]', space=smem, size = 0x4, offset = 0x4, fixed_abs, tag = 'smem constant byte address 0x4 - core index']
  #allocation1 [shape = 'u32[144,128]{1,0:T(1,128)}', space=vmem, size = 0x12000, scoped, tag = 'internal scratch']
  #allocation2 [shape = 'f32[256,32]{1,0:T(8,128)}', space=vmem, size = 0x20000, scoped, tag = 'scratch operand']
  #allocation3 [shape = 'f32[128,32]{1,0:T(8,128)}', space=vmem, size = 0x10000, scoped, tag = 'scratch operand']
  %s0 = inlined_call_operand.vmem [shape: bf16[512,147], index: 0, kind: input, shape index: {}]
  %s1 = inlined_call_operand.vmem [shape: bf16[147,32], index: 1, kind: input, shape index: {}]
  %s2 = inlined_call_operand.vmem [shape: f32[1,32], index: 2, kind: input, shape index: {}]
  %s3 = inlined_call_operand.hbm [shape: f32[128,32], index: 3, kind: output, shape index: {}]
  %s4 = sld [smem:[#allocation0]]
  $region45: #{forward.1} parent=0
    _
  %s6 = ssub.s32 1, %s4
  %s7 = scalar_select 0, %s6, %s4
  $region1: #{forward.1} parent=0
    #allocation4 [shape = 'u8[65536]{0}', space=vmem, size = 0x10000, scoped, tag = 'output window, operand 0']
    #allocation5 [shape = 's32[2]{0}', space=sflag, size = 0x8, scoped, tag = 'scoped memory for forward.1']
    %8 = vsyncpa [#allocation5], 0
    %s9 = scalar_lea.sflag [#allocation5], 1
    %10 = vsyncpa %s9, 0
    loop: start=0, step=1, limit=4
    $region2: #{forward.1} parent=1 // loop_pre_header
      _
    $region3: #{forward.1} parent=1 // loop_header
      %s12 = sphi 0, %s16
      %p13 = scmp.ge.s32.totalorder %s12, 4
      %s22 = sphi 0, %s24
      %s25 = sphi 0, %s22
      %s26 = sphi 0, %s25
      %s42 = sphi 0, %s26
      %s46 = sphi 0, %s46
      %s48 = sphi 0, %s46
      %s49 = sphi 0, %s48
      %s63 = sphi 0, %s49
      %s67 = sphi 0, %s67
      %s69 = sphi 0, %s67
      %s70 = sphi 0, %s69
      %s84 = sphi 0, %s70
      %s90 = sphi 0, %s92
      %s93 = sphi 0, %s90
      %s94 = sphi 0, %s93
      %s110 = sphi 0, %s94
    $region4: #{forward.1} parent=1 // loop_header_branch
      %15 = sbr.rel (%p13) target = $region8
    $region5: #{forward.1} parent=1 // loop_body
      %s17 = ssub.s32 %s12, 1
      %s18 = ssub.s32 %s12, 2
      %s19 = sadd.s32 %s12, 1
      %s20 = ssub.s32 %s12, %s19
      %p21 = scmp.eq.s32.totalorder %s20, 0
      %s23 = sadd.s32 %s22, 1
      %s24 = scalar_select %p21, %s22, %s23
      %p27 = pneg %p21
      %p28 = scmp.eq.s32.totalorder %s12, 1
      %p29 = por %p27, %p28
      %p30 = scmp.ne.s32.totalorder %s22, %s25
      %p31 = scmp.eq.s32.totalorder %s12, 0
      %p32 = por %p30, %p31
      %p33 = scmp.ne.s32.totalorder %s22, %s25
      %p34 = scmp.eq.s32.totalorder %s17, 1
      %p35 = por %p33, %p34
      %p36 = scmp.ne.s32.totalorder %s25, %s26
      %p37 = scmp.eq.s32.totalorder %s17, 0
      %p38 = por %p36, %p37
      %p39 = scmp.ne.s32.totalorder %s25, %s26
      %p40 = scmp.eq.s32.totalorder %s18, 1
      %p41 = por %p39, %p40
      %p43 = scmp.ne.s32.totalorder %s26, %s42
      %p44 = scmp.eq.s32.totalorder %s18, 0
      %p45 = por %p43, %p44
      %s47 = sadd.s32 %s46, 1
      %p50 = scmp.eq.s32.totalorder %s12, 1
      %p51 = scmp.ne.s32.totalorder %s46, %s48
      %p52 = scmp.eq.s32.totalorder %s12, 0
      %p53 = por %p51, %p52
      %p54 = scmp.ne.s32.totalorder %s46, %s48
      %p55 = scmp.eq.s32.totalorder %s17, 1
      %p56 = por %p54, %p55
      %p57 = scmp.ne.s32.totalorder %s48, %s49
      %p58 = scmp.eq.s32.totalorder %s17, 0
      %p59 = por %p57, %p58
      %p60 = scmp.ne.s32.totalorder %s48, %s49
      %p61 = scmp.eq.s32.totalorder %s18, 1
      %p62 = por %p60, %p61
      %p64 = scmp.ne.s32.totalorder %s49, %s63
      %p65 = scmp.eq.s32.totalorder %s18, 0
      %p66 = por %p64, %p65
      %s68 = sadd.s32 %s67, 1
      %p71 = scmp.eq.s32.totalorder %s12, 1
      %p72 = scmp.ne.s32.totalorder %s67, %s69
      %p73 = scmp.eq.s32.totalorder %s12, 0
      %p74 = por %p72, %p73
      %p75 = scmp.ne.s32.totalorder %s67, %s69
      %p76 = scmp.eq.s32.totalorder %s17, 1
      %p77 = por %p75, %p76
      %p78 = scmp.ne.s32.totalorder %s69, %s70
      %p79 = scmp.eq.s32.totalorder %s17, 0
      %p80 = por %p78, %p79
      %p81 = scmp.ne.s32.totalorder %s69, %s70
      %p82 = scmp.eq.s32.totalorder %s18, 1
      %p83 = por %p81, %p82
      %p85 = scmp.ne.s32.totalorder %s70, %s84
      %p86 = scmp.eq.s32.totalorder %s18, 0
      %p87 = por %p85, %p86
      %s88 = ssub.s32 %s12, %s19
      %p89 = scmp.eq.s32.totalorder %s88, 0
      %s91 = sadd.s32 %s90, 1
      %s92 = scalar_select %p89, %s90, %s91
      %p95 = pneg %p89
      %p96 = scmp.eq.s32.totalorder %s12, 1
      %p97 = por %p95, %p96
      %p98 = scmp.ne.s32.totalorder %s90, %s93
      %p99 = scmp.eq.s32.totalorder %s12, 0
      %p100 = por %p98, %p99
      %p101 = scmp.ne.s32.totalorder %s90, %s93
      %p102 = scmp.eq.s32.totalorder %s17, 1
      %p103 = por %p101, %p102
      %p104 = scmp.ne.s32.totalorder %s93, %s94
      %p105 = scmp.eq.s32.totalorder %s17, 0
      %p106 = por %p104, %p105
      %p107 = scmp.ne.s32.totalorder %s93, %s94
      %p108 = scmp.eq.s32.totalorder %s18, 1
      %p109 = por %p107, %p108
      %p111 = scmp.ne.s32.totalorder %s94, %s110
      %p112 = scmp.eq.s32.totalorder %s18, 0
      %p113 = por %p111, %p112
      %p114 = scmp.le.s32.totalorder 1, %s12
      %p115 = scmp.lt.s32.totalorder %s12, 3
      %p116 = pnand %p114, %p115
      %p117 = pneg %p116
      // Predicated region
      $region9: #{forward.1} parent=5 // pred_check
        _
      $region10: #{forward.1} parent=5 // pred_check_branch
        %119 = sbr.rel (%p116) target = $region12
      $region11: #{forward.1} parent=5 // pred_region
        %s120 = ssub.s32 %s12, 1
        // Predicated region
        $region13: #{forward.1} parent=11 // pred_check
          %p121 = pneg %p59
        $region14: #{forward.1} parent=11 // pred_check_branch
          %123 = sbr.rel (%p121) target = $region16
        $region15: #{forward.1} parent=11 // pred_region
          _
        $region16: #{forward.1} parent=11 // pred_fallthru
          _
        // Predicated region
        $region17: #{forward.1} parent=11 // pred_check
          %p124 = pneg %p80
        $region18: #{forward.1} parent=11 // pred_check_branch
          %126 = sbr.rel (%p124) target = $region20
        $region19: #{forward.1} parent=11 // pred_region
          _
        $region20: #{forward.1} parent=11 // pred_fallthru
          _
      $region12: #{forward.1} parent=5 // pred_fallthru
        _
      %p127 = scmp.lt.s32.totalorder %s12, 2
      // Predicated region
      $region21: #{forward.1} parent=5 // pred_check
        %p128 = pneg %p127
      $region22: #{forward.1} parent=5 // pred_check_branch
        %130 = sbr.rel (%p128) target = $region24
      $region23: #{forward.1} parent=5 // pred_region
        // Predicated region
        $region25: #{forward.1} parent=23 // pred_check
          %p131 = pneg %p32
        $region26: #{forward.1} parent=23 // pred_check_branch
          %133 = sbr.rel (%p131) target = $region28
        $region27: #{forward.1} parent=23 // pred_region
          %s134 = smul.u32 32, %s12
          %p135 = scmp.lt.s32.totalorder %s134, 63
          %s136 = scalar_select %p135, %s134, 63
          %s137 = smul.addr %s136, 2
          %s138 = smul.addr %s137, 4
          %s139 = scalar_lea.vmem %s0, %s138
          %s140 = smul.u32 32, %s12
        $region28: #{forward.1} parent=23 // pred_fallthru
          _
      $region24: #{forward.1} parent=5 // pred_fallthru
        _
      %p141 = scmp.le.s32.totalorder 1, %s12
      %p142 = scmp.lt.s32.totalorder %s12, 3
      %p143 = pnand %p141, %p142
      %p144 = pneg %p143
      // Predicated region
      $region29: #{forward.1} parent=5 // pred_check
        _
      $region30: #{forward.1} parent=5 // pred_check_branch
        %146 = sbr.rel (%p143) target = $region32
      $region31: #{forward.1} parent=5 // pred_region
        %s147 = ssub.s32 %s12, 1
        %s148 = smul.u32 32, %s17
        %p149 = scmp.lt.s32.totalorder %s148, 63
        %s150 = scalar_select %p149, %s148, 63
        %s151 = smul.addr %s150, 2
        %s152 = smul.addr %s151, 4
        %s153 = scalar_lea.vmem %s0, %s152
        %p154 = pneg %p38
        %p155 = pneg %p35
        %p156 = pneg %p59
        %p157 = pneg %p56
        %p158 = pneg %p80
        %p159 = pneg %p77
        %p160 = pneg %p106
        %p161 = pneg %p103
        %s162 = sand.u32 %s93, 1
        %s163 = scalar_lea.sflag [#allocation5], %s162
        %s164 = sand.u32 %s93, 1
        %s165 = smul.addr %s164, 64
        %s166 = scalar_lea.vmem [#allocation4], %s165
        %s167 = smul.u32 32, %s17
        %p168 = scmp.lt.s32.totalorder %s167, 63
        %s169 = scalar_select %p168, %s167, 63
        %s170 = smul.addr %s169, 2
        %s171 = smul.addr %s170, 4
        %s172 = scalar_lea.vmem %s0, %s171
        %s173 = smul.u32 32, %s17
        %s174 = smul.u32 8, %s17
        %v176 = vld [vmem:[%s172] sm:$0xff]
        %v177 = vld [vmem:[%s172 + $0x8] sm:$0xff]
        %v178 = vld [vmem:[%s172 + $0x10] sm:$0xff]
        %v179 = vld [vmem:[%s172 + $0x18] sm:$0xff]
        %v180 = vld [vmem:[%s172 + $0x20] sm:$0xff]
        %v181 = vld [vmem:[%s172 + $0x28] sm:$0xff]
        %v182 = vld [vmem:[%s172 + $0x30] sm:$0xff]
        %v183 = vld [vmem:[%s172 + $0x38] sm:$0xff]
        %v184 = vld [vmem:[%s172 + $0x40] sm:$0xff]
        %v185 = vld [vmem:[%s172 + $0x48] sm:$0xff]
        %v186 = vld [vmem:[%s172 + $0x50] sm:$0xff]
        %v187 = vld [vmem:[%s172 + $0x58] sm:$0xff]
        %v188 = vld [vmem:[%s172 + $0x60] sm:$0xff]
        %v189 = vld [vmem:[%s172 + $0x68] sm:$0xff]
        %v190 = vld [vmem:[%s172 + $0x70] sm:$0xff]
        %v191 = vld [vmem:[%s172 + $0x78] sm:$0xff]
        %v192 = vld [vmem:[%s172 + $0x80] sm:$0xff]
        %v193 = vld [vmem:[%s172 + $0x88] sm:$0xff]
        %v194 = vld [vmem:[%s172 + $0x90] sm:$0xff]
        %v195 = vld [vmem:[%s172 + $0x98] sm:$0xff]
        %v196 = vld [vmem:[%s172 + $0xa0] sm:$0xff]
        %v197 = vld [vmem:[%s172 + $0xa8] sm:$0xff]
        %v198 = vld [vmem:[%s172 + $0xb0] sm:$0xff]
        %v199 = vld [vmem:[%s172 + $0xb8] sm:$0xff]
        %v200 = vld [vmem:[%s172 + $0xc0] sm:$0xff]
        %v201 = vld [vmem:[%s172 + $0xc8] sm:$0xff]
        %v202 = vld [vmem:[%s172 + $0xd0] sm:$0xff]
        %v203 = vld [vmem:[%s172 + $0xd8] sm:$0xff]
        %v204 = vld [vmem:[%s172 + $0xe0] sm:$0xff]
        %v205 = vld [vmem:[%s172 + $0xe8] sm:$0xff]
        %v206 = vld [vmem:[%s172 + $0xf0] sm:$0xff]
        %v207 = vld [vmem:[%s172 + $0xf8] sm:$0xff]
        %v208 = vld [vmem:[%s1] sm:$0xf]
        %v209 = vld [vmem:[%s1 + $0x4] sm:$0xf]
        %v210 = vld [vmem:[%s1 + $0x8] sm:$0xf]
        %v211 = vld [vmem:[%s1 + $0xc] sm:$0xf]
        %v212 = vld [vmem:[%s1 + $0x10] sm:$0xf]
        %v213 = vld [vmem:[%s1 + $0x14] sm:$0xf]
        %v214 = vld [vmem:[%s1 + $0x18] sm:$0xf]
        %v215 = vld [vmem:[%s1 + $0x1c] sm:$0xf]
        %v216 = vld [vmem:[%s1 + $0x20] sm:$0xf]
        %v217 = vld [vmem:[%s1 + $0x24] sm:$0xf]
        %v218 = vld [vmem:[%s1 + $0x28] sm:$0xf]
        %v219 = vld [vmem:[%s1 + $0x2c] sm:$0xf]
        %v220 = vld [vmem:[%s1 + $0x30] sm:$0xf]
        %v221 = vld [vmem:[%s1 + $0x34] sm:$0xf]
        %v222 = vld [vmem:[%s1 + $0x38] sm:$0xf]
        %v223 = vld [vmem:[%s1 + $0x3c] sm:$0xf]
        %v224 = vld [vmem:[%s1 + $0x40] sm:$0xf]
        %v225 = vld [vmem:[%s1 + $0x44] sm:$0xf]
        %v226 = vld [vmem:[%s1 + $0x48] sm:$0x3]
        %v227 = vld [vmem:[%s2] sm:$0x1]
        %v229 = vlaneseq
        %v230 = vshrl.u32 %v229, 7
        %v231 = vsub.s32 0, %v230
        %v232 = vrot.slane %v227, %v231
        %v266 = vunpack.c.l.b16 %v176
        %v267 = vunpack.c.h.b16 %v176
        %v268 = vunpack.c.l.b16 %v177
        %v269 = vunpack.c.h.b16 %v177
        %v270 = vunpack.c.l.b16 %v178
        %v271 = vunpack.c.h.b16 %v178
        %v272 = vunpack.c.l.b16 %v179
        %v273 = vunpack.c.h.b16 %v179
        %v274 = vunpack.c.l.b16 %v180
        %v275 = vunpack.c.h.b16 %v180
        %v276 = vunpack.c.l.b16 %v181
        %v277 = vunpack.c.h.b16 %v181
        %v278 = vunpack.c.l.b16 %v182
        %v279 = vunpack.c.h.b16 %v182
        %v280 = vunpack.c.l.b16 %v183
        %v281 = vunpack.c.h.b16 %v183
        %v282 = vunpack.c.l.b16 %v184
        %v283 = vunpack.c.h.b16 %v184
        %v284 = vunpack.c.l.b16 %v185
        %v285 = vunpack.c.h.b16 %v185
        %v286 = vunpack.c.l.b16 %v186
        %v287 = vunpack.c.h.b16 %v186
        %v288 = vunpack.c.l.b16 %v187
        %v289 = vunpack.c.h.b16 %v187
        %v290 = vunpack.c.l.b16 %v188
        %v291 = vunpack.c.h.b16 %v188
        %v292 = vunpack.c.l.b16 %v189
        %v293 = vunpack.c.h.b16 %v189
        %v294 = vunpack.c.l.b16 %v190
        %v295 = vunpack.c.h.b16 %v190
        %v296 = vunpack.c.l.b16 %v191
        %v297 = vunpack.c.h.b16 %v191
        %v298 = vunpack.c.l.b16 %v192
        %v299 = vunpack.c.h.b16 %v192
        %v300 = vunpack.c.l.b16 %v193
        %v301 = vunpack.c.h.b16 %v193
        %v302 = vunpack.c.l.b16 %v194
        %v303 = vunpack.c.h.b16 %v194
        %v304 = vunpack.c.l.b16 %v195
        %v305 = vunpack.c.h.b16 %v195
        %v306 = vunpack.c.l.b16 %v196
        %v307 = vunpack.c.h.b16 %v196
        %v308 = vunpack.c.l.b16 %v197
        %v309 = vunpack.c.h.b16 %v197
        %v310 = vunpack.c.l.b16 %v198
        %v311 = vunpack.c.h.b16 %v198
        %v312 = vunpack.c.l.b16 %v199
        %v313 = vunpack.c.h.b16 %v199
        %v314 = vunpack.c.l.b16 %v200
        %v315 = vunpack.c.h.b16 %v200
        %v316 = vunpack.c.l.b16 %v201
        %v317 = vunpack.c.h.b16 %v201
        %v318 = vunpack.c.l.b16 %v202
        %v319 = vunpack.c.h.b16 %v202
        %v320 = vunpack.c.l.b16 %v203
        %v321 = vunpack.c.h.b16 %v203
        %v322 = vunpack.c.l.b16 %v204
        %v323 = vunpack.c.h.b16 %v204
        %v324 = vunpack.c.l.b16 %v205
        %v325 = vunpack.c.h.b16 %v205
        %v326 = vunpack.c.l.b16 %v206
        %v327 = vunpack.c.h.b16 %v206
        %v328 = vunpack.c.l.b16 %v207
        %v329 = vunpack.c.h.b16 %v207
        %v330 = vpack.c.b16 %v268, %v266
        %v331 = vpack.c.b16 %v269, %v267
        %v332 = vpack.c.b16 %v272, %v270
        %v333 = vpack.c.b16 %v273, %v271
        %v334 = vpack.c.b16 %v276, %v274
        %v335 = vpack.c.b16 %v277, %v275
        %v336 = vpack.c.b16 %v280, %v278
        %v337 = vpack.c.b16 %v281, %v279
        %v338 = vpack.c.b16 %v284, %v282
        %v339 = vpack.c.b16 %v285, %v283
        %v340 = vpack.c.b16 %v288, %v286
        %v341 = vpack.c.b16 %v289, %v287
        %v342 = vpack.c.b16 %v292, %v290
        %v343 = vpack.c.b16 %v293, %v291
        %v344 = vpack.c.b16 %v296, %v294
        %v345 = vpack.c.b16 %v297, %v295
        %v346 = vpack.c.b16 %v300, %v298
        %v347 = vpack.c.b16 %v301, %v299
        %v348 = vpack.c.b16 %v304, %v302
        %v349 = vpack.c.b16 %v305, %v303
        %v350 = vpack.c.b16 %v308, %v306
        %v351 = vpack.c.b16 %v309, %v307
        %v352 = vpack.c.b16 %v312, %v310
        %v353 = vpack.c.b16 %v313, %v311
        %v354 = vpack.c.b16 %v316, %v314
        %v355 = vpack.c.b16 %v317, %v315
        %v356 = vpack.c.b16 %v320, %v318
        %v357 = vpack.c.b16 %v321, %v319
        %v358 = vpack.c.b16 %v324, %v322
        %v359 = vpack.c.b16 %v325, %v323
        %v360 = vpack.c.b16 %v328, %v326
        %v361 = vpack.c.b16 %v329, %v327
        %v397 = vunpack.c.l.b16 %v208
        %v398 = vunpack.c.l.b16 %v209
        %v399 = vunpack.c.l.b16 %v210
        %v400 = vunpack.c.l.b16 %v211
        %v401 = vunpack.c.l.b16 %v212
        %v402 = vunpack.c.l.b16 %v213
        %v403 = vunpack.c.l.b16 %v214
        %v404 = vunpack.c.l.b16 %v215
        %v405 = vunpack.c.l.b16 %v216
        %v406 = vunpack.c.l.b16 %v217
        %v407 = vunpack.c.l.b16 %v218
        %v408 = vunpack.c.l.b16 %v219
        %v409 = vunpack.c.l.b16 %v220
        %v410 = vunpack.c.l.b16 %v221
        %v411 = vunpack.c.l.b16 %v222
        %v412 = vunpack.c.l.b16 %v223
        %v413 = vunpack.c.l.b16 %v224
        %v414 = vunpack.c.l.b16 %v225
        %v415 = vunpack.c.l.b16 %v226
        %v416 = vpack.c.b16 %v398, %v397
        %v417 = vpack.c.b16 %v400, %v399
        %v418 = vpack.c.b16 %v402, %v401
        %v419 = vpack.c.b16 %v404, %v403
        %v420 = vpack.c.b16 %v406, %v405
        %v421 = vpack.c.b16 %v408, %v407
        %v422 = vpack.c.b16 %v410, %v409
        %v423 = vpack.c.b16 %v412, %v411
        %v424 = vpack.c.b16 %v414, %v413
        %v425 = vpack.c.b16 %v415, %v415
        %vm435 = vcmask 154624
        %v437 = vsel %vm435, %v331, 0
        %v440 = vsel %vm435, %v333, 0
        %v443 = vsel %vm435, %v335, 0
        %v446 = vsel %vm435, %v337, 0
        %v449 = vsel %vm435, %v339, 0
        %v452 = vsel %vm435, %v341, 0
        %v455 = vsel %vm435, %v343, 0
        %v458 = vsel %vm435, %v345, 0
        %v461 = vsel %vm435, %v347, 0
        %v464 = vsel %vm435, %v349, 0
        %v467 = vsel %vm435, %v351, 0
        %v470 = vsel %vm435, %v353, 0
        %v473 = vsel %vm435, %v355, 0
        %v476 = vsel %vm435, %v357, 0
        %v479 = vsel %vm435, %v359, 0
        %v482 = vsel %vm435, %v361, 0
        %vm484 = vcmask 1040384
        %vm485 = vcmask 1041408
        %v486 = vsel %vm484, 4294967295, 65535
        %v487 = vsel %vm485, %v486, 0
        %v489 = vand.u32 %v425, %v487
        %491 = vmatprep.subr.bf16.mxu0 0
        %492 = vmatpush1.bf16.msra.mxu0 %v416
        %493 = vmatprep.subr.bf16.mxu0 0
        %494 = vmatpush1.bf16.msra.mxu0 %v417
        %495 = vmatprep.subr.bf16.mxu0 0
        %496 = vmatpush1.bf16.msra.mxu0 %v418
        %497 = vmatprep.subr.bf16.mxu0 0
        %498 = vmatpush1.bf16.msra.mxu0 %v419
        %499 = vmatprep.subr.bf16.mxu0 0
        %500 = vmatpush1.bf16.msra.mxu0 %v420
        %501 = vmatprep.subr.bf16.mxu0 0
        %502 = vmatpush1.bf16.msra.mxu0 %v421
        %503 = vmatprep.subr.bf16.mxu0 0
        %504 = vmatpush1.bf16.msra.mxu0 %v422
        %505 = vmatprep.subr.bf16.mxu0 0
        %506 = vmatpush1.bf16.msra.mxu0 %v423
        %507 = vmatprep.subr.bf16.mxu0 0
        %508 = vmatpush1.bf16.msra.mxu0 %v424
        %509 = vmatprep.subr.bf16.mxu0 0
        %510 = vmatpush1.bf16.msra.mxu0 %v489
        %511 = vmatprep.subr.bf16.mxu0 0
        %512 = vmatpush1.bf16.msra.mxu0 0
        %513 = vmatprep.subr.bf16.mxu0 0
        %514 = vmatpush1.bf16.msra.mxu0 0
        %515 = vmatprep.subr.bf16.mxu0 0
        %516 = vmatpush1.bf16.msra.mxu0 0
        %517 = vmatprep.subr.bf16.mxu0 0
        %518 = vmatpush1.bf16.msra.mxu0 0
        %519 = vmatprep.subr.bf16.mxu0 0
        %520 = vmatpush1.bf16.msra.mxu0 0
        %521 = vmatprep.subr.bf16.mxu0 0
        %522 = vmatpush1.bf16.msra.mxu0 0
        %523 = vmatprep.mubr.bf16.mxu0 %v437
        %524 = vmatmul.mubr.bf16.gmra.mrb[0].mxu0 %v330
        %v525 = vpop.f32.mrb[0].mxu0
        %v526 = vadd.f32 %v232, %v525
        %v527 = vpop.f32.mrb[0].mxu0
        %v528 = vpop.f32.mrb[0].mxu0
        %v529 = vadd.f32 %v232, %v528
        %v530 = vpop.f32.mrb[0].mxu0
        %531 = vmatprep.mubr.bf16.mxu0 %v440
        %532 = vmatmul.mubr.bf16.gmra.mrb[0].mxu0 %v332
        %v533 = vpop.f32.mrb[0].mxu0
        %v534 = vadd.f32 %v232, %v533
        %v535 = vpop.f32.mrb[0].mxu0
        %v536 = vpop.f32.mrb[0].mxu0
        %v537 = vadd.f32 %v232, %v536
        %v538 = vpop.f32.mrb[0].mxu0
        %539 = vmatprep.mubr.bf16.mxu0 %v443
        %540 = vmatmul.mubr.bf16.gmra.mrb[0].mxu0 %v334
        %v541 = vpop.f32.mrb[0].mxu0
        %v542 = vadd.f32 %v232, %v541
        %v543 = vpop.f32.mrb[0].mxu0
        %v544 = vpop.f32.mrb[0].mxu0
        %v545 = vadd.f32 %v232, %v544
        %v546 = vpop.f32.mrb[0].mxu0
        %547 = vmatprep.mubr.bf16.mxu0 %v446
        %548 = vmatmul.mubr.bf16.gmra.mrb[0].mxu0 %v336
        %v549 = vpop.f32.mrb[0].mxu0
        %v550 = vadd.f32 %v232, %v549
        %v551 = vpop.f32.mrb[0].mxu0
        %v552 = vpop.f32.mrb[0].mxu0
        %v553 = vadd.f32 %v232, %v552
        %v554 = vpop.f32.mrb[0].mxu0
        %555 = vmatprep.mubr.bf16.mxu0 %v449
        %556 = vmatmul.mubr.bf16.gmra.mrb[0].mxu0 %v338
        %v557 = vpop.f32.mrb[0].mxu0
        %v558 = vadd.f32 %v232, %v557
        %v559 = vpop.f32.mrb[0].mxu0
        %v560 = vpop.f32.mrb[0].mxu0
        %v561 = vadd.f32 %v232, %v560
        %v562 = vpop.f32.mrb[0].mxu0
        %563 = vmatprep.mubr.bf16.mxu0 %v452
        %564 = vmatmul.mubr.bf16.gmra.mrb[0].mxu0 %v340
        %v565 = vpop.f32.mrb[0].mxu0
        %v566 = vadd.f32 %v232, %v565
        %v567 = vpop.f32.mrb[0].mxu0
        %v568 = vpop.f32.mrb[0].mxu0
        %v569 = vadd.f32 %v232, %v568
        %v570 = vpop.f32.mrb[0].mxu0
        %571 = vmatprep.mubr.bf16.mxu0 %v455
        %572 = vmatmul.mubr.bf16.gmra.mrb[0].mxu0 %v342
        %v573 = vpop.f32.mrb[0].mxu0
        %v574 = vadd.f32 %v232, %v573
        %v575 = vpop.f32.mrb[0].mxu0
        %v576 = vpop.f32.mrb[0].mxu0
        %v577 = vadd.f32 %v232, %v576
        %v578 = vpop.f32.mrb[0].mxu0
        %579 = vmatprep.mubr.bf16.mxu0 %v458
        %580 = vmatmul.mubr.bf16.gmra.mrb[0].mxu0 %v344
        %v581 = vpop.f32.mrb[0].mxu0
        %v582 = vadd.f32 %v232, %v581
        %v583 = vpop.f32.mrb[0].mxu0
        %v584 = vpop.f32.mrb[0].mxu0
        %v585 = vadd.f32 %v232, %v584
        %v586 = vpop.f32.mrb[0].mxu0
        %587 = vmatprep.mubr.bf16.mxu0 %v461
        %588 = vmatmul.mubr.bf16.gmra.mrb[0].mxu0 %v346
        %v589 = vpop.f32.mrb[0].mxu0
        %v590 = vadd.f32 %v232, %v589
        %v591 = vpop.f32.mrb[0].mxu0
        %v592 = vpop.f32.mrb[0].mxu0
        %v593 = vadd.f32 %v232, %v592
        %v594 = vpop.f32.mrb[0].mxu0
        %595 = vmatprep.mubr.bf16.mxu0 %v464
        %596 = vmatmul.mubr.bf16.gmra.mrb[0].mxu0 %v348
        %v597 = vpop.f32.mrb[0].mxu0
        %v598 = vadd.f32 %v232, %v597
        %v599 = vpop.f32.mrb[0].mxu0
        %v600 = vpop.f32.mrb[0].mxu0
        %v601 = vadd.f32 %v232, %v600
        %v602 = vpop.f32.mrb[0].mxu0
        %603 = vmatprep.mubr.bf16.mxu0 %v467
        %604 = vmatmul.mubr.bf16.gmra.mrb[0].mxu0 %v350
        %v605 = vpop.f32.mrb[0].mxu0
        %v606 = vadd.f32 %v232, %v605
        %v607 = vpop.f32.mrb[0].mxu0
        %v608 = vpop.f32.mrb[0].mxu0
        %v609 = vadd.f32 %v232, %v608
        %v610 = vpop.f32.mrb[0].mxu0
        %611 = vmatprep.mubr.bf16.mxu0 %v470
        %612 = vmatmul.mubr.bf16.gmra.mrb[0].mxu0 %v352
        %v613 = vpop.f32.mrb[0].mxu0
        %v614 = vadd.f32 %v232, %v613
        %v615 = vpop.f32.mrb[0].mxu0
        %v616 = vpop.f32.mrb[0].mxu0
        %v617 = vadd.f32 %v232, %v616
        %v618 = vpop.f32.mrb[0].mxu0
        %619 = vmatprep.mubr.bf16.mxu0 %v473
        %620 = vmatmul.mubr.bf16.gmra.mrb[0].mxu0 %v354
        %v621 = vpop.f32.mrb[0].mxu0
        %v622 = vadd.f32 %v232, %v621
        %v623 = vpop.f32.mrb[0].mxu0
        %v624 = vpop.f32.mrb[0].mxu0
        %v625 = vadd.f32 %v232, %v624
        %v626 = vpop.f32.mrb[0].mxu0
        %627 = vmatprep.mubr.bf16.mxu0 %v476
        %628 = vmatmul.mubr.bf16.gmra.mrb[0].mxu0 %v356
        %v629 = vpop.f32.mrb[0].mxu0
        %v630 = vadd.f32 %v232, %v629
        %v631 = vpop.f32.mrb[0].mxu0
        %v632 = vpop.f32.mrb[0].mxu0
        %v633 = vadd.f32 %v232, %v632
        %v634 = vpop.f32.mrb[0].mxu0
        %635 = vmatprep.mubr.bf16.mxu0 %v479
        %636 = vmatmul.mubr.bf16.gmra.mrb[0].mxu0 %v358
        %v637 = vpop.f32.mrb[0].mxu0
        %v638 = vadd.f32 %v232, %v637
        %v639 = vpop.f32.mrb[0].mxu0
        %v640 = vpop.f32.mrb[0].mxu0
        %v641 = vadd.f32 %v232, %v640
        %v642 = vpop.f32.mrb[0].mxu0
        %643 = vmatprep.mubr.bf16.mxu0 %v482
        %644 = vmatmul.mubr.bf16.gmra.mrb[0].mxu0 %v360
        %v645 = vpop.f32.mrb[0].mxu0
        %v646 = vadd.f32 %v232, %v645
        %v647 = vpop.f32.mrb[0].mxu0
        %v648 = vpop.f32.mrb[0].mxu0
        %v649 = vadd.f32 %v232, %v648
        %v650 = vpop.f32.mrb[0].mxu0
        %651 = vdwg.mxu0
        %v652 = vmax.f32 %v526, 0.0
        %v653 = vmax.f32 %v529, 0.0
        %v654 = vmax.f32 %v534, 0.0
        %v655 = vmax.f32 %v537, 0.0
        %v656 = vmax.f32 %v542, 0.0
        %v657 = vmax.f32 %v545, 0.0
        %v658 = vmax.f32 %v550, 0.0
        %v659 = vmax.f32 %v553, 0.0
        %v660 = vmax.f32 %v558, 0.0
        %v661 = vmax.f32 %v561, 0.0
        %v662 = vmax.f32 %v566, 0.0
        %v663 = vmax.f32 %v569, 0.0
        %v664 = vmax.f32 %v574, 0.0
        %v665 = vmax.f32 %v577, 0.0
        %v666 = vmax.f32 %v582, 0.0
        %v667 = vmax.f32 %v585, 0.0
        %v668 = vmax.f32 %v590, 0.0
        %v669 = vmax.f32 %v593, 0.0
        %v670 = vmax.f32 %v598, 0.0
        %v671 = vmax.f32 %v601, 0.0
        %v672 = vmax.f32 %v606, 0.0
        %v673 = vmax.f32 %v609, 0.0
        %v674 = vmax.f32 %v614, 0.0
        %v675 = vmax.f32 %v617, 0.0
        %v676 = vmax.f32 %v622, 0.0
        %v677 = vmax.f32 %v625, 0.0
        %v678 = vmax.f32 %v630, 0.0
        %v679 = vmax.f32 %v633, 0.0
        %v680 = vmax.f32 %v638, 0.0
        %v681 = vmax.f32 %v641, 0.0
        %v682 = vmax.f32 %v646, 0.0
        %v683 = vmax.f32 %v649, 0.0
        %vm684 = vcmask 261120
        %685 = vst.msk [vmem:[#allocation2] sm:$0xff] %vm684, %v652
        %686 = vst.msk [vmem:[#allocation2 + $0x8] sm:$0xff] %vm684, %v653
        %687 = vst.msk [vmem:[#allocation2 + $0x10] sm:$0xff] %vm684, %v654
        %688 = vst.msk [vmem:[#allocation2 + $0x18] sm:$0xff] %vm684, %v655
        %689 = vst.msk [vmem:[#allocation2 + $0x20] sm:$0xff] %vm684, %v656
        %690 = vst.msk [vmem:[#allocation2 + $0x28] sm:$0xff] %vm684, %v657
        %691 = vst.msk [vmem:[#allocation2 + $0x30] sm:$0xff] %vm684, %v658
        %692 = vst.msk [vmem:[#allocation2 + $0x38] sm:$0xff] %vm684, %v659
        %693 = vst.msk [vmem:[#allocation2 + $0x40] sm:$0xff] %vm684, %v660
        %694 = vst.msk [vmem:[#allocation2 + $0x48] sm:$0xff] %vm684, %v661
        %695 = vst.msk [vmem:[#allocation2 + $0x50] sm:$0xff] %vm684, %v662
        %696 = vst.msk [vmem:[#allocation2 + $0x58] sm:$0xff] %vm684, %v663
        %697 = vst.msk [vmem:[#allocation2 + $0x60] sm:$0xff] %vm684, %v664
        %698 = vst.msk [vmem:[#allocation2 + $0x68] sm:$0xff] %vm684, %v665
        %699 = vst.msk [vmem:[#allocation2 + $0x70] sm:$0xff] %vm684, %v666
        %700 = vst.msk [vmem:[#allocation2 + $0x78] sm:$0xff] %vm684, %v667
        %701 = vst.msk [vmem:[#allocation2 + $0x80] sm:$0xff] %vm684, %v668
        %702 = vst.msk [vmem:[#allocation2 + $0x88] sm:$0xff] %vm684, %v669
        %703 = vst.msk [vmem:[#allocation2 + $0x90] sm:$0xff] %vm684, %v670
        %704 = vst.msk [vmem:[#allocation2 + $0x98] sm:$0xff] %vm684, %v671
        %705 = vst.msk [vmem:[#allocation2 + $0xa0] sm:$0xff] %vm684, %v672
        %706 = vst.msk [vmem:[#allocation2 + $0xa8] sm:$0xff] %vm684, %v673
        %707 = vst.msk [vmem:[#allocation2 + $0xb0] sm:$0xff] %vm684, %v674
        %708 = vst.msk [vmem:[#allocation2 + $0xb8] sm:$0xff] %vm684, %v675
        %709 = vst.msk [vmem:[#allocation2 + $0xc0] sm:$0xff] %vm684, %v676
        %710 = vst.msk [vmem:[#allocation2 + $0xc8] sm:$0xff] %vm684, %v677
        %711 = vst.msk [vmem:[#allocation2 + $0xd0] sm:$0xff] %vm684, %v678
        %712 = vst.msk [vmem:[#allocation2 + $0xd8] sm:$0xff] %vm684, %v679
        %713 = vst.msk [vmem:[#allocation2 + $0xe0] sm:$0xff] %vm684, %v680
        %714 = vst.msk [vmem:[#allocation2 + $0xe8] sm:$0xff] %vm684, %v681
        %715 = vst.msk [vmem:[#allocation2 + $0xf0] sm:$0xff] %vm684, %v682
        %716 = vst.msk [vmem:[#allocation2 + $0xf8] sm:$0xff] %vm684, %v683
        %v717 = vlaneseq
        %v718 = vshrl.u32 %v717, 7
        %v719 = vadd.s32 %v718, 8
        %v720 = vadd.s32 %v718, 16
        %v721 = vadd.s32 %v718, 24
        %v722 = vadd.s32 %v718, 32
        %v723 = vadd.s32 %v718, 40
        %v724 = vadd.s32 %v718, 48
        %v725 = vadd.s32 %v718, 56
        %v726 = vadd.s32 %v718, 64
        %v727 = vadd.s32 %v718, 72
        %v728 = vadd.s32 %v718, 80
        %v729 = vadd.s32 %v718, 88
        %v730 = vadd.s32 %v718, 96
        %v731 = vadd.s32 %v718, 104
        %v732 = vadd.s32 %v718, 112
        %v733 = vadd.s32 %v718, 120
        %vm734 = vcmp.lt.s32.totalorder %v718, 0
        %v735 = vsub.s32 0, %v718
        %v736 = vsel %vm734, %v735, %v718
        %v737 = vshrl.u32 %v736, 6
        %v738 = vand.u32 %v736, 63
        %v739 = vsub.s32 0, %v738
        %v740 = vsel %vm734, %v739, %v738
        %vm741 = vcmp.lt.s32.totalorder %v719, 0
        %v742 = vsub.s32 0, %v719
        %v743 = vsel %vm741, %v742, %v719
        %v744 = vshrl.u32 %v743, 6
        %v745 = vand.u32 %v743, 63
        %v746 = vsub.s32 0, %v745
        %v747 = vsel %vm741, %v746, %v745
        %vm748 = vcmp.lt.s32.totalorder %v720, 0
        %v749 = vsub.s32 0, %v720
        %v750 = vsel %vm748, %v749, %v720
        %v751 = vshrl.u32 %v750, 6
        %v752 = vand.u32 %v750, 63
        %v753 = vsub.s32 0, %v752
        %v754 = vsel %vm748, %v753, %v752
        %vm755 = vcmp.lt.s32.totalorder %v721, 0
        %v756 = vsub.s32 0, %v721
        %v757 = vsel %vm755, %v756, %v721
        %v758 = vshrl.u32 %v757, 6
        %v759 = vand.u32 %v757, 63
        %v760 = vsub.s32 0, %v759
        %v761 = vsel %vm755, %v760, %v759
        %vm762 = vcmp.lt.s32.totalorder %v722, 0
        %v763 = vsub.s32 0, %v722
        %v764 = vsel %vm762, %v763, %v722
        %v765 = vshrl.u32 %v764, 6
        %v766 = vand.u32 %v764, 63
        %v767 = vsub.s32 0, %v766
        %v768 = vsel %vm762, %v767, %v766
        %vm769 = vcmp.lt.s32.totalorder %v723, 0
        %v770 = vsub.s32 0, %v723
        %v771 = vsel %vm769, %v770, %v723
        %v772 = vshrl.u32 %v771, 6
        %v773 = vand.u32 %v771, 63
        %v774 = vsub.s32 0, %v773
        %v775 = vsel %vm769, %v774, %v773
        %vm776 = vcmp.lt.s32.totalorder %v724, 0
        %v777 = vsub.s32 0, %v724
        %v778 = vsel %vm776, %v777, %v724
        %v779 = vshrl.u32 %v778, 6
        %v780 = vand.u32 %v778, 63
        %v781 = vsub.s32 0, %v780
        %v782 = vsel %vm776, %v781, %v780
        %vm783 = vcmp.lt.s32.totalorder %v725, 0
        %v784 = vsub.s32 0, %v725
        %v785 = vsel %vm783, %v784, %v725
        %v786 = vshrl.u32 %v785, 6
        %v787 = vand.u32 %v785, 63
        %v788 = vsub.s32 0, %v787
        %v789 = vsel %vm783, %v788, %v787
        %vm790 = vcmp.lt.s32.totalorder %v726, 0
        %v791 = vsub.s32 0, %v726
        %v792 = vsel %vm790, %v791, %v726
        %v793 = vshrl.u32 %v792, 6
        %v794 = vand.u32 %v792, 63
        %v795 = vsub.s32 0, %v794
        %v796 = vsel %vm790, %v795, %v794
        %vm797 = vcmp.lt.s32.totalorder %v727, 0
        %v798 = vsub.s32 0, %v727
        %v799 = vsel %vm797, %v798, %v727
        %v800 = vshrl.u32 %v799, 6
        %v801 = vand.u32 %v799, 63
        %v802 = vsub.s32 0, %v801
        %v803 = vsel %vm797, %v802, %v801
        %vm804 = vcmp.lt.s32.totalorder %v728, 0
        %v805 = vsub.s32 0, %v728
        %v806 = vsel %vm804, %v805, %v728
        %v807 = vshrl.u32 %v806, 6
        %v808 = vand.u32 %v806, 63
        %v809 = vsub.s32 0, %v808
        %v810 = vsel %vm804, %v809, %v808
        %vm811 = vcmp.lt.s32.totalorder %v729, 0
        %v812 = vsub.s32 0, %v729
        %v813 = vsel %vm811, %v812, %v729
        %v814 = vshrl.u32 %v813, 6
        %v815 = vand.u32 %v813, 63
        %v816 = vsub.s32 0, %v815
        %v817 = vsel %vm811, %v816, %v815
        %vm818 = vcmp.lt.s32.totalorder %v730, 0
        %v819 = vsub.s32 0, %v730
        %v820 = vsel %vm818, %v819, %v730
        %v821 = vshrl.u32 %v820, 6
        %v822 = vand.u32 %v820, 63
        %v823 = vsub.s32 0, %v822
        %v824 = vsel %vm818, %v823, %v822
        %vm825 = vcmp.lt.s32.totalorder %v731, 0
        %v826 = vsub.s32 0, %v731
        %v827 = vsel %vm825, %v826, %v731
        %v828 = vshrl.u32 %v827, 6
        %v829 = vand.u32 %v827, 63
        %v830 = vsub.s32 0, %v829
        %v831 = vsel %vm825, %v830, %v829
        %vm832 = vcmp.lt.s32.totalorder %v732, 0
        %v833 = vsub.s32 0, %v732
        %v834 = vsel %vm832, %v833, %v732
        %v835 = vshrl.u32 %v834, 6
        %v836 = vand.u32 %v834, 63
        %v837 = vsub.s32 0, %v836
        %v838 = vsel %vm832, %v837, %v836
        %vm839 = vcmp.lt.s32.totalorder %v733, 0
        %v840 = vsub.s32 0, %v733
        %v841 = vsel %vm839, %v840, %v733
        %v842 = vshrl.u32 %v841, 6
        %v843 = vand.u32 %v841, 63
        %v844 = vsub.s32 0, %v843
        %v845 = vsel %vm839, %v844, %v843
        %vm846 = vcmp.ne.s32.totalorder %v740, 0
        %vm847 = vcmp.ne.s32.totalorder %v747, 0
        %vm848 = vcmp.ne.s32.totalorder %v754, 0
        %vm849 = vcmp.ne.s32.totalorder %v761, 0
        %vm850 = vcmp.ne.s32.totalorder %v768, 0
        %vm851 = vcmp.ne.s32.totalorder %v775, 0
        %vm852 = vcmp.ne.s32.totalorder %v782, 0
        %vm853 = vcmp.ne.s32.totalorder %v789, 0
        %vm854 = vcmp.ne.s32.totalorder %v796, 0
        %vm855 = vcmp.ne.s32.totalorder %v803, 0
        %vm856 = vcmp.ne.s32.totalorder %v810, 0
        %vm857 = vcmp.ne.s32.totalorder %v817, 0
        %vm858 = vcmp.ne.s32.totalorder %v824, 0
        %vm859 = vcmp.ne.s32.totalorder %v831, 0
        %vm860 = vcmp.ne.s32.totalorder %v838, 0
        %vm861 = vcmp.ne.s32.totalorder %v845, 0
        %vm862 = vcmp.lt.s32.totalorder %v740, 0
        %vm863 = vcmp.lt.s32.totalorder %v747, 0
        %vm864 = vcmp.lt.s32.totalorder %v754, 0
        %vm865 = vcmp.lt.s32.totalorder %v761, 0
        %vm866 = vcmp.lt.s32.totalorder %v768, 0
        %vm867 = vcmp.lt.s32.totalorder %v775, 0
        %vm868 = vcmp.lt.s32.totalorder %v782, 0
        %vm869 = vcmp.lt.s32.totalorder %v789, 0
        %vm870 = vcmp.lt.s32.totalorder %v796, 0
        %vm871 = vcmp.lt.s32.totalorder %v803, 0
        %vm872 = vcmp.lt.s32.totalorder %v810, 0
        %vm873 = vcmp.lt.s32.totalorder %v817, 0
        %vm874 = vcmp.lt.s32.totalorder %v824, 0
        %vm875 = vcmp.lt.s32.totalorder %v831, 0
        %vm876 = vcmp.lt.s32.totalorder %v838, 0
        %vm877 = vcmp.lt.s32.totalorder %v845, 0
        %vm878 = vmand %vm862, %vm846
        %vm879 = vmand %vm863, %vm847
        %vm880 = vmand %vm864, %vm848
        %vm881 = vmand %vm865, %vm849
        %vm882 = vmand %vm866, %vm850
        %vm883 = vmand %vm867, %vm851
        %vm884 = vmand %vm868, %vm852
        %vm885 = vmand %vm869, %vm853
        %vm886 = vmand %vm870, %vm854
        %vm887 = vmand %vm871, %vm855
        %vm888 = vmand %vm872, %vm856
        %vm889 = vmand %vm873, %vm857
        %vm890 = vmand %vm874, %vm858
        %vm891 = vmand %vm875, %vm859
        %vm892 = vmand %vm876, %vm860
        %vm893 = vmand %vm877, %vm861
        %v894 = vadd.s32 %v740, 64
        %v895 = vadd.s32 %v747, 64
        %v896 = vadd.s32 %v754, 64
        %v897 = vadd.s32 %v761, 64
        %v898 = vadd.s32 %v768, 64
        %v899 = vadd.s32 %v775, 64
        %v900 = vadd.s32 %v782, 64
        %v901 = vadd.s32 %v789, 64
        %v902 = vadd.s32 %v796, 64
        %v903 = vadd.s32 %v803, 64
        %v904 = vadd.s32 %v810, 64
        %v905 = vadd.s32 %v817, 64
        %v906 = vadd.s32 %v824, 64
        %v907 = vadd.s32 %v831, 64
        %v908 = vadd.s32 %v838, 64
        %v909 = vadd.s32 %v845, 64
        %v910 = vsel %vm878, %v894, %v740
        %v911 = vsel %vm879, %v895, %v747
        %v912 = vsel %vm880, %v896, %v754
        %v913 = vsel %vm881, %v897, %v761
        %v914 = vsel %vm882, %v898, %v768
        %v915 = vsel %vm883, %v899, %v775
        %v916 = vsel %vm884, %v900, %v782
        %v917 = vsel %vm885, %v901, %v789
        %v918 = vsel %vm886, %v902, %v796
        %v919 = vsel %vm887, %v903, %v803
        %v920 = vsel %vm888, %v904, %v810
        %v921 = vsel %vm889, %v905, %v817
        %v922 = vsel %vm890, %v906, %v824
        %v923 = vsel %vm891, %v907, %v831
        %v924 = vsel %vm892, %v908, %v838
        %v925 = vsel %vm893, %v909, %v845
        %vm926 = vcmp.ge.s32.totalorder %v910, 8
        %vm927 = vcmp.ge.s32.totalorder %v911, 8
        %vm928 = vcmp.ge.s32.totalorder %v912, 8
        %vm929 = vcmp.ge.s32.totalorder %v913, 8
        %vm930 = vcmp.ge.s32.totalorder %v914, 8
        %vm931 = vcmp.ge.s32.totalorder %v915, 8
        %vm932 = vcmp.ge.s32.totalorder %v916, 8
        %vm933 = vcmp.ge.s32.totalorder %v917, 8
        %vm934 = vcmp.ge.s32.totalorder %v918, 8
        %vm935 = vcmp.ge.s32.totalorder %v919, 8
        %vm936 = vcmp.ge.s32.totalorder %v920, 8
        %vm937 = vcmp.ge.s32.totalorder %v921, 8
        %vm938 = vcmp.ge.s32.totalorder %v922, 8
        %vm939 = vcmp.ge.s32.totalorder %v923, 8
        %vm940 = vcmp.ge.s32.totalorder %v924, 8
        %vm941 = vcmp.ge.s32.totalorder %v925, 8
        %v942 = vld [vmem:[#allocation2 + $0x78] sm:$0xff]
        %v943 = vld [vmem:[#allocation2 + $0x80] sm:$0xff]
        %v944 = vld [vmem:[#allocation2 + $0x88] sm:$0xff]
        %v945 = vld [vmem:[#allocation2 + $0x90] sm:$0xff]
        %v946 = vld [vmem:[#allocation2 + $0x98] sm:$0xff]
        %v947 = vld [vmem:[#allocation2 + $0xa0] sm:$0xff]
        %v948 = vld [vmem:[#allocation2 + $0xa8] sm:$0xff]
        %v949 = vld [vmem:[#allocation2 + $0xb0] sm:$0xff]
        %v950 = vld [vmem:[#allocation2 + $0xb8] sm:$0xff]
        %v951 = vld [vmem:[#allocation2 + $0xc0] sm:$0xff]
        %v952 = vld [vmem:[#allocation2 + $0xc8] sm:$0xff]
        %v953 = vld [vmem:[#allocation2 + $0xd0] sm:$0xff]
        %v954 = vld [vmem:[#allocation2 + $0xd8] sm:$0xff]
        %v955 = vld [vmem:[#allocation2 + $0xe0] sm:$0xff]
        %v956 = vld [vmem:[#allocation2 + $0xe8] sm:$0xff]
        %v957 = vld [vmem:[#allocation2 + $0xf0] sm:$0xff]
        %v958 = vsel %vm926, 1, 0
        %v959 = vsel %vm927, 1, 0
        %v960 = vsel %vm928, 1, 0
        %v961 = vsel %vm929, 1, 0
        %v962 = vsel %vm930, 1, 0
        %v963 = vsel %vm931, 1, 0
        %v964 = vsel %vm932, 1, 0
        %v965 = vsel %vm933, 1, 0
        %v966 = vsel %vm934, 1, 0
        %v967 = vsel %vm935, 1, 0
        %v968 = vsel %vm936, 1, 0
        %v969 = vsel %vm937, 1, 0
        %v970 = vsel %vm938, 1, 0
        %v971 = vsel %vm939, 1, 0
        %v972 = vsel %vm940, 1, 0
        %v973 = vsel %vm941, 1, 0
        %vm974 = vcmp.eq.s32.totalorder %v958, 1
        %vm975 = vcmp.eq.s32.totalorder %v959, 1
        %vm976 = vcmp.eq.s32.totalorder %v960, 1
        %vm977 = vcmp.eq.s32.totalorder %v961, 1
        %vm978 = vcmp.eq.s32.totalorder %v962, 1
        %vm979 = vcmp.eq.s32.totalorder %v963, 1
        %vm980 = vcmp.eq.s32.totalorder %v964, 1
        %vm981 = vcmp.eq.s32.totalorder %v965, 1
        %vm982 = vcmp.eq.s32.totalorder %v966, 1
        %vm983 = vcmp.eq.s32.totalorder %v967, 1
        %vm984 = vcmp.eq.s32.totalorder %v968, 1
        %vm985 = vcmp.eq.s32.totalorder %v969, 1
        %vm986 = vcmp.eq.s32.totalorder %v970, 1
        %vm987 = vcmp.eq.s32.totalorder %v971, 1
        %vm988 = vcmp.eq.s32.totalorder %v972, 1
        %vm989 = vcmp.eq.s32.totalorder %v973, 1
        %v990 = vsel %vm974, %v942, 0.0
        %v991 = vsel %vm975, %v943, 0.0
        %v992 = vsel %vm976, %v944, 0.0
        %v993 = vsel %vm977, %v945, 0.0
        %v994 = vsel %vm978, %v946, 0.0
        %v995 = vsel %vm979, %v947, 0.0
        %v996 = vsel %vm980, %v948, 0.0
        %v997 = vsel %vm981, %v949, 0.0
        %v998 = vsel %vm982, %v950, 0.0
        %v999 = vsel %vm983, %v951, 0.0
        %v1000 = vsel %vm984, %v952, 0.0
        %v1001 = vsel %vm985, %v953, 0.0
        %v1002 = vsel %vm986, %v954, 0.0
        %v1003 = vsel %vm987, %v955, 0.0
        %v1004 = vsel %vm988, %v956, 0.0
        %v1005 = vsel %vm989, %v957, 0.0
        %v1006 = vld [vmem:[#allocation2] sm:$0xff]
        %v1007 = vld [vmem:[#allocation2 + $0x8] sm:$0xff]
        %v1008 = vld [vmem:[#allocation2 + $0x10] sm:$0xff]
        %v1009 = vld [vmem:[#allocation2 + $0x18] sm:$0xff]
        %v1010 = vld [vmem:[#allocation2 + $0x20] sm:$0xff]
        %v1011 = vld [vmem:[#allocation2 + $0x28] sm:$0xff]
        %v1012 = vld [vmem:[#allocation2 + $0x30] sm:$0xff]
        %v1013 = vld [vmem:[#allocation2 + $0x38] sm:$0xff]
        %v1014 = vld [vmem:[#allocation2 + $0x40] sm:$0xff]
        %v1015 = vld [vmem:[#allocation2 + $0x48] sm:$0xff]
        %v1016 = vld [vmem:[#allocation2 + $0x50] sm:$0xff]
        %v1017 = vld [vmem:[#allocation2 + $0x58] sm:$0xff]
        %v1018 = vld [vmem:[#allocation2 + $0x60] sm:$0xff]
        %v1019 = vld [vmem:[#allocation2 + $0x68] sm:$0xff]
        %v1020 = vld [vmem:[#allocation2 + $0x70] sm:$0xff]
        %v1021 = vld [vmem:[#allocation2 + $0xf8] sm:$0xff]
        %v1022 = vmax.f32 %v1006, %v943
        %v1023 = vmax.f32 %v1007, %v944
        %v1024 = vmax.f32 %v1008, %v945
        %v1025 = vmax.f32 %v1009, %v946
        %v1026 = vmax.f32 %v1010, %v947
        %v1027 = vmax.f32 %v1011, %v948
        %v1028 = vmax.f32 %v1012, %v949
        %v1029 = vmax.f32 %v1013, %v950
        %v1030 = vmax.f32 %v1014, %v951
        %v1031 = vmax.f32 %v1015, %v952
        %v1032 = vmax.f32 %v1016, %v953
        %v1033 = vmax.f32 %v1017, %v954
        %v1034 = vmax.f32 %v1018, %v955
        %v1035 = vmax.f32 %v1019, %v956
        %v1036 = vmax.f32 %v1020, %v957
        %v1037 = vmax.f32 %v942, %v1021
        %v1038 = vmax.f32 %v1022, %v990
        %v1039 = vmax.f32 %v1023, %v991
        %v1040 = vmax.f32 %v1024, %v992
        %v1041 = vmax.f32 %v1025, %v993
        %v1042 = vmax.f32 %v1026, %v994
        %v1043 = vmax.f32 %v1027, %v995
        %v1044 = vmax.f32 %v1028, %v996
        %v1045 = vmax.f32 %v1029, %v997
        %v1046 = vmax.f32 %v1030, %v998
        %v1047 = vmax.f32 %v1031, %v999
        %v1048 = vmax.f32 %v1032, %v1000
        %v1049 = vmax.f32 %v1033, %v1001
        %v1050 = vmax.f32 %v1034, %v1002
        %v1051 = vmax.f32 %v1035, %v1003
        %v1052 = vmax.f32 %v1036, %v1004
        %v1053 = vmax.f32 %v1037, %v1005
        %1054 = vst.msk [vmem:[#allocation3] sm:$0xff] %vm684, %v1038
        %1055 = vst.msk [vmem:[#allocation3 + $0x8] sm:$0xff] %vm684, %v1039
        %1056 = vst.msk [vmem:[#allocation3 + $0x10] sm:$0xff] %vm684, %v1040
        %1057 = vst.msk [vmem:[#allocation3 + $0x18] sm:$0xff] %vm684, %v1041
        %1058 = vst.msk [vmem:[#allocation3 + $0x20] sm:$0xff] %vm684, %v1042
        %1059 = vst.msk [vmem:[#allocation3 + $0x28] sm:$0xff] %vm684, %v1043
        %1060 = vst.msk [vmem:[#allocation3 + $0x30] sm:$0xff] %vm684, %v1044
        %1061 = vst.msk [vmem:[#allocation3 + $0x38] sm:$0xff] %vm684, %v1045
        %1062 = vst.msk [vmem:[#allocation3 + $0x40] sm:$0xff] %vm684, %v1046
        %1063 = vst.msk [vmem:[#allocation3 + $0x48] sm:$0xff] %vm684, %v1047
        %1064 = vst.msk [vmem:[#allocation3 + $0x50] sm:$0xff] %vm684, %v1048
        %1065 = vst.msk [vmem:[#allocation3 + $0x58] sm:$0xff] %vm684, %v1049
        %1066 = vst.msk [vmem:[#allocation3 + $0x60] sm:$0xff] %vm684, %v1050
        %1067 = vst.msk [vmem:[#allocation3 + $0x68] sm:$0xff] %vm684, %v1051
        %1068 = vst.msk [vmem:[#allocation3 + $0x70] sm:$0xff] %vm684, %v1052
        %1069 = vst.msk [vmem:[#allocation3 + $0x78] sm:$0xff] %vm684, %v1053
        %vm1070 = vcmp.lt.s32.totalorder %v718, 0
        %v1071 = vsub.s32 0, %v718
        %v1072 = vsel %vm1070, %v1071, %v718
        %v1073 = vshrl.u32 %v1072, 3
        %v1074 = vand.u32 %v1072, 7
        %v1075 = vsub.s32 0, %v1074
        %v1076 = vsel %vm1070, %v1075, %v1074
        %vm1077 = vcmp.lt.s32.totalorder %v719, 0
        %v1078 = vsub.s32 0, %v719
        %v1079 = vsel %vm1077, %v1078, %v719
        %v1080 = vshrl.u32 %v1079, 3
        %v1081 = vand.u32 %v1079, 7
        %v1082 = vsub.s32 0, %v1081
        %v1083 = vsel %vm1077, %v1082, %v1081
        %vm1084 = vcmp.lt.s32.totalorder %v720, 0
        %v1085 = vsub.s32 0, %v720
        %v1086 = vsel %vm1084, %v1085, %v720
        %v1087 = vshrl.u32 %v1086, 3
        %v1088 = vand.u32 %v1086, 7
        %v1089 = vsub.s32 0, %v1088
        %v1090 = vsel %vm1084, %v1089, %v1088
        %vm1091 = vcmp.lt.s32.totalorder %v721, 0
        %v1092 = vsub.s32 0, %v721
        %v1093 = vsel %vm1091, %v1092, %v721
        %v1094 = vshrl.u32 %v1093, 3
        %v1095 = vand.u32 %v1093, 7
        %v1096 = vsub.s32 0, %v1095
        %v1097 = vsel %vm1091, %v1096, %v1095
        %vm1098 = vcmp.lt.s32.totalorder %v722, 0
        %v1099 = vsub.s32 0, %v722
        %v1100 = vsel %vm1098, %v1099, %v722
        %v1101 = vshrl.u32 %v1100, 3
        %v1102 = vand.u32 %v1100, 7
        %v1103 = vsub.s32 0, %v1102
        %v1104 = vsel %vm1098, %v1103, %v1102
        %vm1105 = vcmp.lt.s32.totalorder %v723, 0
        %v1106 = vsub.s32 0, %v723
        %v1107 = vsel %vm1105, %v1106, %v723
        %v1108 = vshrl.u32 %v1107, 3
        %v1109 = vand.u32 %v1107, 7
        %v1110 = vsub.s32 0, %v1109
        %v1111 = vsel %vm1105, %v1110, %v1109
        %vm1112 = vcmp.lt.s32.totalorder %v724, 0
        %v1113 = vsub.s32 0, %v724
        %v1114 = vsel %vm1112, %v1113, %v724
        %v1115 = vshrl.u32 %v1114, 3
        %v1116 = vand.u32 %v1114, 7
        %v1117 = vsub.s32 0, %v1116
        %v1118 = vsel %vm1112, %v1117, %v1116
        %vm1119 = vcmp.lt.s32.totalorder %v725, 0
        %v1120 = vsub.s32 0, %v725
        %v1121 = vsel %vm1119, %v1120, %v725
        %v1122 = vshrl.u32 %v1121, 3
        %v1123 = vand.u32 %v1121, 7
        %v1124 = vsub.s32 0, %v1123
        %v1125 = vsel %vm1119, %v1124, %v1123
        %vm1126 = vcmp.ne.s32.totalorder %v1076, 0
        %vm1127 = vcmp.ne.s32.totalorder %v1083, 0
        %vm1128 = vcmp.ne.s32.totalorder %v1090, 0
        %vm1129 = vcmp.ne.s32.totalorder %v1097, 0
        %vm1130 = vcmp.ne.s32.totalorder %v1104, 0
        %vm1131 = vcmp.ne.s32.totalorder %v1111, 0
        %vm1132 = vcmp.ne.s32.totalorder %v1118, 0
        %vm1133 = vcmp.ne.s32.totalorder %v1125, 0
        %vm1134 = vcmp.lt.s32.totalorder %v1076, 0
        %vm1135 = vcmp.lt.s32.totalorder %v1083, 0
        %vm1136 = vcmp.lt.s32.totalorder %v1090, 0
        %vm1137 = vcmp.lt.s32.totalorder %v1097, 0
        %vm1138 = vcmp.lt.s32.totalorder %v1104, 0
        %vm1139 = vcmp.lt.s32.totalorder %v1111, 0
        %vm1140 = vcmp.lt.s32.totalorder %v1118, 0
        %vm1141 = vcmp.lt.s32.totalorder %v1125, 0
        %vm1142 = vmand %vm1134, %vm1126
        %vm1143 = vmand %vm1135, %vm1127
        %vm1144 = vmand %vm1136, %vm1128
        %vm1145 = vmand %vm1137, %vm1129
        %vm1146 = vmand %vm1138, %vm1130
        %vm1147 = vmand %vm1139, %vm1131
        %vm1148 = vmand %vm1140, %vm1132
        %vm1149 = vmand %vm1141, %vm1133
        %v1150 = vadd.s32 %v1076, 8
        %v1151 = vadd.s32 %v1083, 8
        %v1152 = vadd.s32 %v1090, 8
        %v1153 = vadd.s32 %v1097, 8
        %v1154 = vadd.s32 %v1104, 8
        %v1155 = vadd.s32 %v1111, 8
        %v1156 = vadd.s32 %v1118, 8
        %v1157 = vadd.s32 %v1125, 8
        %v1158 = vsel %vm1142, %v1150, %v1076
        %v1159 = vsel %vm1143, %v1151, %v1083
        %v1160 = vsel %vm1144, %v1152, %v1090
        %v1161 = vsel %vm1145, %v1153, %v1097
        %v1162 = vsel %vm1146, %v1154, %v1104
        %v1163 = vsel %vm1147, %v1155, %v1111
        %v1164 = vsel %vm1148, %v1156, %v1118
        %v1165 = vsel %vm1149, %v1157, %v1125
        %vm1166 = vcmp.ne.s32.totalorder %v1158, 0
        %vm1167 = vcmp.ne.s32.totalorder %v1159, 0
        %vm1168 = vcmp.ne.s32.totalorder %v1160, 0
        %vm1169 = vcmp.ne.s32.totalorder %v1161, 0
        %vm1170 = vcmp.ne.s32.totalorder %v1162, 0
        %vm1171 = vcmp.ne.s32.totalorder %v1163, 0
        %vm1172 = vcmp.ne.s32.totalorder %v1164, 0
        %vm1173 = vcmp.ne.s32.totalorder %v1165, 0
        %v1174 = vld [vmem:[#allocation3 + $0x3f] sm:$0xff]
        %v1175 = vld [vmem:[#allocation3 + $0x47] sm:$0xff]
        %v1176 = vld [vmem:[#allocation3 + $0x4f] sm:$0xff]
        %v1177 = vld [vmem:[#allocation3 + $0x57] sm:$0xff]
        %v1178 = vld [vmem:[#allocation3 + $0x5f] sm:$0xff]
        %v1179 = vld [vmem:[#allocation3 + $0x67] sm:$0xff]
        %v1180 = vld [vmem:[#allocation3 + $0x6f] sm:$0xff]
        %v1181 = vld [vmem:[#allocation3 + $0x77] sm:$0xff]
        %v1182 = vsel %vm1166, 1, 0
        %v1183 = vsel %vm1167, 1, 0
        %v1184 = vsel %vm1168, 1, 0
        %v1185 = vsel %vm1169, 1, 0
        %v1186 = vsel %vm1170, 1, 0
        %v1187 = vsel %vm1171, 1, 0
        %v1188 = vsel %vm1172, 1, 0
        %v1189 = vsel %vm1173, 1, 0
        %vm1190 = vcmp.eq.s32.totalorder %v1182, 1
        %vm1191 = vcmp.eq.s32.totalorder %v1183, 1
        %vm1192 = vcmp.eq.s32.totalorder %v1184, 1
        %vm1193 = vcmp.eq.s32.totalorder %v1185, 1
        %vm1194 = vcmp.eq.s32.totalorder %v1186, 1
        %vm1195 = vcmp.eq.s32.totalorder %v1187, 1
        %vm1196 = vcmp.eq.s32.totalorder %v1188, 1
        %vm1197 = vcmp.eq.s32.totalorder %v1189, 1
        %v1198 = vsel %vm1190, %v1174, 0.0
        %v1199 = vsel %vm1191, %v1175, 0.0
        %v1200 = vsel %vm1192, %v1176, 0.0
        %v1201 = vsel %vm1193, %v1177, 0.0
        %v1202 = vsel %vm1194, %v1178, 0.0
        %v1203 = vsel %vm1195, %v1179, 0.0
        %v1204 = vsel %vm1196, %v1180, 0.0
        %v1205 = vsel %vm1197, %v1181, 0.0
        %v1206 = vld [vmem:[#allocation3] sm:$0xff]
        %v1207 = vld [vmem:[#allocation3 + $0x8] sm:$0xff]
        %v1208 = vld [vmem:[#allocation3 + $0x10] sm:$0xff]
        %v1209 = vld [vmem:[#allocation3 + $0x18] sm:$0xff]
        %v1210 = vld [vmem:[#allocation3 + $0x20] sm:$0xff]
        %v1211 = vld [vmem:[#allocation3 + $0x28] sm:$0xff]
        %v1212 = vld [vmem:[#allocation3 + $0x30] sm:$0xff]
        %v1213 = vld [vmem:[#allocation3 + $0x38] sm:$0xff]
        %v1214 = vld [vmem:[#allocation3 + $0x40] sm:$0xff]
        %v1215 = vld [vmem:[#allocation3 + $0x48] sm:$0xff]
        %v1216 = vld [vmem:[#allocation3 + $0x50] sm:$0xff]
        %v1217 = vld [vmem:[#allocation3 + $0x58] sm:$0xff]
        %v1218 = vld [vmem:[#allocation3 + $0x60] sm:$0xff]
        %v1219 = vld [vmem:[#allocation3 + $0x68] sm:$0xff]
        %v1220 = vld [vmem:[#allocation3 + $0x70] sm:$0xff]
        %v1221 = vld [vmem:[#allocation3 + $0x78] sm:$0xff]
        %v1222 = vmax.f32 %v1206, %v1214
        %v1223 = vmax.f32 %v1207, %v1215
        %v1224 = vmax.f32 %v1208, %v1216
        %v1225 = vmax.f32 %v1209, %v1217
        %v1226 = vmax.f32 %v1210, %v1218
        %v1227 = vmax.f32 %v1211, %v1219
        %v1228 = vmax.f32 %v1212, %v1220
        %v1229 = vmax.f32 %v1213, %v1221
        %v1230 = vmax.f32 %v1222, %v1198
        %v1231 = vmax.f32 %v1223, %v1199
        %v1232 = vmax.f32 %v1224, %v1200
        %v1233 = vmax.f32 %v1225, %v1201
        %v1234 = vmax.f32 %v1226, %v1202
        %v1235 = vmax.f32 %v1227, %v1203
        %v1236 = vmax.f32 %v1228, %v1204
        %v1237 = vmax.f32 %v1229, %v1205
        %1238 = vst.msk [vmem:[%s166] sm:$0xff] %vm684, %v1230
        %1239 = vst.msk [vmem:[%s166 + $0x8] sm:$0xff] %vm684, %v1231
        %1240 = vst.msk [vmem:[%s166 + $0x10] sm:$0xff] %vm684, %v1232
        %1241 = vst.msk [vmem:[%s166 + $0x18] sm:$0xff] %vm684, %v1233
        %1242 = vst.msk [vmem:[%s166 + $0x20] sm:$0xff] %vm684, %v1234
        %1243 = vst.msk [vmem:[%s166 + $0x28] sm:$0xff] %vm684, %v1235
        %1244 = vst.msk [vmem:[%s166 + $0x30] sm:$0xff] %vm684, %v1236
        %1245 = vst.msk [vmem:[%s166 + $0x38] sm:$0xff] %vm684, %v1237
        %s1246 = sand.u32 %s93, 1
        %s1247 = scalar_lea.sflag [#allocation5], %s1246
        %s1248 = sand.u32 %s93, 1
        %s1249 = smul.addr %s1248, 64
        %s1250 = scalar_lea.vmem [#allocation4], %s1249
        // Predicated region
        $region33: #{forward.1} parent=31 // pred_check
          %p1251 = pneg %p103
        $region34: #{forward.1} parent=31 // pred_check_branch
          %1253 = sbr.rel (%p1251) target = $region36
        $region35: #{forward.1} parent=31 // pred_region
          %s1254 = smul.u32 8, %s17
          %s1256 = ssub.s32 1024, 1024
          %1257 = vsyncadd %s1247, %s1256
          %s1258 = smul.addr %s1254, 128
          %s1259 = scalar_lea.hbm %s3, %s1258
          %s1260 = sshll.u32 %s1250, 4
          %s1261 = int_to_ptr.vmem [resolvable:$true] %s1260
          %1266 = dma.vmem_to_hbm [thread:$0]  %s1261, 1024, %s1259, %s1247, 128, 128, 8
        $region36: #{forward.1} parent=31 // pred_fallthru
          _
      $region32: #{forward.1} parent=5 // pred_fallthru
        _
      %p1267 = scmp.le.s32.totalorder 2, %s12
      // Predicated region
      $region37: #{forward.1} parent=5 // pred_check
        %p1268 = pneg %p1267
      $region38: #{forward.1} parent=5 // pred_check_branch
        %1270 = sbr.rel (%p1268) target = $region40
      $region39: #{forward.1} parent=5 // pred_region
        %s1271 = ssub.s32 %s12, 2
        // Predicated region
        $region41: #{forward.1} parent=39 // pred_check
          %p1272 = pneg %p109
        $region42: #{forward.1} parent=39 // pred_check_branch
          %1274 = sbr.rel (%p1272) target = $region44
        $region43: #{forward.1} parent=39 // pred_region
          %s1275 = sand.u32 %s94, 1
          %s1276 = scalar_lea.sflag [#allocation5], %s1275
          %s1277 = sand.u32 %s94, 1
          %s1278 = smul.addr %s1277, 64
          %s1279 = scalar_lea.vmem [#allocation4], %s1278
          %1280 = dma.done %s1276, 1024
        $region44: #{forward.1} parent=39 // pred_fallthru
          _
      $region40: #{forward.1} parent=5 // pred_fallthru
        _
    $region6: #{forward.1} parent=1 // loop_footer
      %s16 = sadd.s32 1, %s12
    $region7: #{forward.1} parent=1 // loop_footer_branch
      %11 = sbr.rel target = $region3
    $region8: #{forward.1} parent=1 // loop_exit
      _
    %1281 = vsyncpa [#allocation5], 1
    %s1282 = scalar_lea.sflag [#allocation5], 1
    %1283 = vsyncpa %s1282, 1

</llo_original>
